<compile_context>
chip_gen: v5e
topology: v5e:2x2
jax: 0.10.0
libtpu: 0.0.40
codegen_flags: <defaults>
</compile_context>

<pallas_src>
import functools

import jax
import jax.numpy as jnp
from jax.experimental import pallas as pl
from jax.experimental.pallas import tpu as pltpu


def _round_up(x, m):
    return ((x + m - 1) // m) * m


# ---------------------------------------------------------------------------
# Kernel
# ---------------------------------------------------------------------------
def mlp_kernel(emb_ref, w1_ref, b1_ref, w2_ref, b2_ref, out_ref, acc_ref,
               *, num_classes):
    """Fused lin1 (K-tiled accumulate) -> lin2 -> softmax.

    Grid = (B_tiles, K_tiles). K (axis 1) is the reduction axis ("arbitrary");
    acc_ref is a (bm, H) float32 VMEM accumulator resident across K.
    """
    k = pl.program_id(1)

    @pl.when(k == 0)
    def _():
        acc_ref[...] = jnp.zeros_like(acc_ref)

    # Steady state: pure MXU accumulate (bf16 inputs, f32 accumulation).
    acc_ref[...] += jnp.dot(emb_ref[...], w1_ref[...],
                            preferred_element_type=jnp.float32)

    # Epilogue only on the last K step: bias, bf16 lin2, masked softmax.
    @pl.when(k == pl.num_programs(1) - 1)
    def _():
        h = acc_ref[...] + b1_ref[...]                        # (bm, H) f32
        logits = jnp.dot(h.astype(jnp.bfloat16), w2_ref[...],
                         preferred_element_type=jnp.float32) + b2_ref[...]
        # Mask padded class lanes (C padded to 128 lanes -> lane-dense,
        # unmasked output stores).
        lane = jax.lax.broadcasted_iota(jnp.int32, logits.shape, 1)
        logits = jnp.where(lane < num_classes, logits, -1e30)
        m = jnp.max(logits, axis=1, keepdims=True)
        e = jnp.exp(logits - m)
        denom = jnp.sum(e, axis=1, keepdims=True)
        out_ref[...] = e * pl.reciprocal(denom, approx=True)


# ---------------------------------------------------------------------------
# One-time parameter preparation (hoisted out of the per-call path)
# ---------------------------------------------------------------------------
def _default_vmem_budget():
    """Generation-aware VMEM budget: ~3/4 of physical, capped at 100 MB.

    v7x (64 MiB/TC) -> ~48 MB; v5e/v6e (128 MiB) -> ~96 MB.
    """
    try:
        phys = pltpu.get_tpu_info().vmem_capacity_bytes
    except Exception:
        phys = 64 * 1024 * 1024          # conservative fallback (v7x per-TC)
    return min(int(phys * 3 // 4), 100 * 1024 * 1024)


def _pipeline_vmem_bytes(bm, tk, H, C_pad):
    return (2 * bm * tk * 2              # emb tiles (bf16, double-buffered)
            + 2 * tk * H * 2             # w1 tiles (bf16, double-buffered)
            + bm * H * 4                 # f32 accumulator scratch
            + 2 * H * C_pad * 2          # w2 (bf16, double-buffered)
            + 2 * bm * C_pad * 4         # output tile (f32, double-buffered)
            + 4 * (H + C_pad) * 4)       # biases + slack


def prepare_params(emb_table, w1, b1, w2, b2, *, tk=8192, bm_cap=512,
                   vmem_budget=None):
    """One-time (per-weight-update) bf16 cast + padding of the parameters.

    Keep the returned dict and reuse it across forward calls: the point is to
    NOT pay the f32->bf16 cast / pad HBM traffic (~380 MB for the real model)
    on every forward pass.

    w1: (S*E, H), b1: (1, H) or (H,), w2: (H, C), b2: (1, C) or (C,)
      -- i.e. the kernel computes x @ W + b.
    tk: requested K tile; use the LARGEST that fits the VMEM budget on every
        generation (v7x included) -- it is auto-capped below.
    """
    LANE = 128
    D1, H = w1.shape
    C = w2.shape[1]
    C_pad = _round_up(C, LANE)

    if vmem_budget is None:
        vmem_budget = _default_vmem_budget()

    # K tile: as large as the VMEM budget allows (each halving of tk doubles
    # the per-step overhead share of the w1 HBM stream).
    tk = _round_up(min(tk, _round_up(D1, LANE)), LANE)
    while tk > LANE and _pipeline_vmem_bytes(bm_cap, tk, H, C_pad) > vmem_budget:
        tk = _round_up(max(tk // 2, LANE), LANE)
    D1_pad = _round_up(D1, tk)

    # bf16 streaming operands (halves HBM bytes of the dominant w1 stream);
    # zero padding keeps the accumulation exact.
    w1_p = jnp.zeros((D1_pad, H), jnp.bfloat16).at[:D1, :].set(
        w1.astype(jnp.bfloat16))
    w2_p = jnp.zeros((H, C_pad), jnp.bfloat16).at[:, :C].set(
        w2.astype(jnp.bfloat16))
    b1_p = jnp.asarray(b1, jnp.float32).reshape(1, H)
    b2_p = jnp.zeros((1, C_pad), jnp.float32).at[:, :C].set(
        jnp.asarray(b2, jnp.float32).reshape(1, C))
    emb_bf16 = emb_table.astype(jnp.bfloat16)

    return dict(emb_table=emb_bf16, w1=w1_p, b1=b1_p, w2=w2_p, b2=b2_p,
                D1=D1, D1_pad=D1_pad, H=H, C=C, C_pad=C_pad,
                tk=tk, bm_cap=bm_cap, vmem_budget=vmem_budget)


# ---------------------------------------------------------------------------
# Forward pass
# ---------------------------------------------------------------------------
def mlp_forward(x_ids, params, *, bm=None):
    """x_ids: (B, S) int32 token ids. Returns (B, num_classes) float32 probs."""
    B, S = x_ids.shape
    D1, D1_pad = params["D1"], params["D1_pad"]
    H, C, C_pad = params["H"], params["C"], params["C_pad"]
    tk = params["tk"]
    assert S * params["emb_table"].shape[1] == D1

    # --- glue: embedding gather (already bf16) + single pad -----------------
    # TODO(synk): the row gather could be fused into the kernel via
    # PrefetchScalarGridSpec + pl.Element row indices; the w1 stream dominates
    # HBM traffic, so it stays as thin XLA glue here.
    emb_flat = jnp.take(params["emb_table"], x_ids, axis=0).reshape(B, D1)

    SUB = 16                                   # bf16 sublane packing
    B16 = _round_up(B, SUB)
    if bm is None:
        bm = min(B16, params["bm_cap"])        # cap raised to 512: fewer
    bm = _round_up(bm, SUB)                    # w1 re-streams across batch
    B_pad = _round_up(B16, bm)

    emb_p = jax.lax.pad(emb_flat, jnp.array(0.0, dtype=emb_flat.dtype),
                        ((0, B_pad - B, 0), (0, D1_pad - D1, 0)))

    grid = (B_pad // bm, D1_pad // tk)
    kernel = functools.partial(mlp_kernel, num_classes=C)

    flops = 2 * B_pad * D1_pad * H + 2 * B_pad * H * C_pad
    bytes_accessed = (
        (B_pad // bm) * D1_pad * H * 2     # w1 streamed per batch tile (bf16)
        + B_pad * D1_pad * 2               # emb tiles (bf16)
        + H * C_pad * 2                    # w2 (bf16, tiny)
        + B_pad * C_pad * 4                # output
    )

    # TODO(synk): on v7x the batch grid axis is often extent-1; a real 2-TC
    # split would shard H across cores (each core accumulates (bm, H/2)) and
    # combine in VMEM_SHARED for the epilogue, instead of batch-splitting
    # (which would duplicate the w1 stream).
    out = pl.pallas_call(
        kernel,
        out_shape=jax.ShapeDtypeStruct((B_pad, C_pad), jnp.float32),
        grid_spec=pltpu.PrefetchScalarGridSpec(
            num_scalar_prefetch=0,
            grid=grid,
            in_specs=[
                pl.BlockSpec((bm, tk), lambda i, k: (i, k)),      # emb tile
                pl.BlockSpec((tk, H), lambda i, k: (k, 0)),       # w1 tile
                pl.BlockSpec((1, H), lambda i, k: (0, 0)),        # b1
                pl.BlockSpec((H, C_pad), lambda i, k: (0, 0)),    # w2 (bf16)
                pl.BlockSpec((1, C_pad), lambda i, k: (0, 0)),    # b2
            ],
            out_specs=pl.BlockSpec((bm, C_pad), lambda i, k: (i, 0)),
            scratch_shapes=[pltpu.VMEM((bm, H), jnp.float32)],
        ),
        compiler_params=pltpu.CompilerParams(
            dimension_semantics=("parallel", "arbitrary"),
            vmem_limit_bytes=params["vmem_budget"],
        ),
        cost_estimate=pl.CostEstimate(
            flops=flops,
            transcendentals=B_pad * C_pad,
            bytes_accessed=bytes_accessed,
        ),
    )(emb_p, params["w1"], params["b1"], params["w2"], params["b2"])

    return out[:B, :C]


if __name__ == "__main__":
    # Small shapes consistent with the module:
    #   vocab_size=V, emb_dim=E, seq_len=S -> lin1 input dim D1 = S*E
    #   (the real 62336 = seq_len * emb_dim; scaled down here), H stands in
    #   for 1024.
    B, S, V, E = 2, 16, 100, 32       # D1 = 512
    H = 128
    NUM_CLASSES = 4

    key = jax.random.PRNGKey(0)
    k_emb, k_w1, k_b1, k_w2, k_b2, k_x = jax.random.split(key, 6)

    # init_parameters(): every parameter ~ Uniform(-0.05, 0.05)
    emb_table = jax.random.uniform(k_emb, (V, E), jnp.float32, -0.05, 0.05)
    w1 = jax.random.uniform(k_w1, (S * E, H), jnp.float32, -0.05, 0.05)
    b1 = jax.random.uniform(k_b1, (1, H), jnp.float32, -0.05, 0.05)
    w2 = jax.random.uniform(k_w2, (H, NUM_CLASSES), jnp.float32, -0.05, 0.05)
    b2 = jax.random.uniform(k_b2, (1, NUM_CLASSES), jnp.float32, -0.05, 0.05)

    x_ids = jax.random.randint(k_x, (B, S), 0, V, dtype=jnp.int32)

    # Prepare (cast/pad) the parameters ONCE; use tk=128 here so the K-tiled
    # accumulator path (4 grid steps) is exercised even at these toy sizes.
    # At real model sizes, leave tk at its default (8192, VMEM-auto-capped).
    params = prepare_params(emb_table, w1, b1, w2, b2, tk=128)
    out = mlp_forward(x_ids, params)
    jax.block_until_ready(out)

    # Pure-JAX f32 reference (matches PyTorch forward semantics).
    emb_flat = jnp.take(emb_table, x_ids, axis=0).reshape(B, -1)
    ref_logits = emb_flat @ w1 + b1
    ref_logits = ref_logits @ w2 + b2
    ref = jax.nn.softmax(ref_logits, axis=1)

    assert out.shape == (B, NUM_CLASSES)
    # bf16 operands + approx reciprocal: rows sum to 1 only approximately.
    assert jnp.allclose(jnp.sum(out, axis=1), 1.0, atol=1e-2)
    assert jnp.allclose(out, ref, atol=2e-2)

    print("KERNEL_OK")
</pallas_src>

<mosaic_0001>
module attributes {stable_mosaic.version = 11 : i64} {
  func.func @mlp_kernel(%arg0: i32, %arg1: i32, %arg2: memref<16x128xbf16, #tpu.memory_space<vmem>>, %arg3: memref<128x128xbf16, #tpu.memory_space<vmem>>, %arg4: memref<1x128xf32, #tpu.memory_space<vmem>>, %arg5: memref<128x128xbf16, #tpu.memory_space<vmem>>, %arg6: memref<1x128xf32, #tpu.memory_space<vmem>>, %arg7: memref<16x128xf32, #tpu.memory_space<vmem>>, %arg8: memref<16x128xf32, #tpu.memory_space<vmem>>) attributes {dimension_semantics = [#tpu.dimension_semantics<parallel>, #tpu.dimension_semantics<arbitrary>], iteration_bounds = array<i64: 1, 4>, scalar_prefetch = 0 : i64, scratch_operands = 1 : i64, tpu.core_type = #tpu.core_type<tc>, window_params = [{transform_indices = @transform_0, window_bounds = array<i64: 16, 128>}, {transform_indices = @transform_1, window_bounds = array<i64: 128, 128>}, {pipeline_mode = #tpu.pipeline_mode<synchronous>, transform_indices = @transform_2, window_bounds = array<i64: 1, 128>}, {pipeline_mode = #tpu.pipeline_mode<synchronous>, transform_indices = @transform_3, window_bounds = array<i64: 128, 128>}, {pipeline_mode = #tpu.pipeline_mode<synchronous>, transform_indices = @transform_4, window_bounds = array<i64: 1, 128>}, {transform_indices = @transform_5, window_bounds = array<i64: 16, 128>}]} {
    %c0_i32 = arith.constant 0 : i32
    %0 = arith.cmpi eq, %arg1, %c0_i32 : i32
    %1 = arith.extui %0 : i1 to i32
    %c0_i32_0 = arith.constant 0 : i32
    %2 = arith.cmpi ne, %1, %c0_i32_0 : i32
    scf.if %2 {
      %cst_9 = arith.constant 0.000000e+00 : f32
      %12 = vector.broadcast %cst_9 : f32 to vector<16x128xf32>
      %c0_10 = arith.constant 0 : index
      %c0_11 = arith.constant 0 : index
      %13 = vector.load %arg8[%c0_10, %c0_11] : memref<16x128xf32, #tpu.memory_space<vmem>>, vector<16x128xf32>
      tpu.vector_store %arg8[%c0_10, %c0_11], %12 {strides = array<i32>} : memref<16x128xf32, #tpu.memory_space<vmem>>, vector<16x128xf32>,
    } else {
    }
    %c0 = arith.constant 0 : index
    %c0_1 = arith.constant 0 : index
    %3 = vector.load %arg8[%c0, %c0_1] : memref<16x128xf32, #tpu.memory_space<vmem>>, vector<16x128xf32>
    %c0_2 = arith.constant 0 : index
    %c0_3 = arith.constant 0 : index
    %4 = vector.load %arg2[%c0_2, %c0_3] : memref<16x128xbf16, #tpu.memory_space<vmem>>, vector<16x128xbf16>
    %c0_4 = arith.constant 0 : index
    %c0_5 = arith.constant 0 : index
    %5 = vector.load %arg3[%c0_4, %c0_5] : memref<128x128xbf16, #tpu.memory_space<vmem>>, vector<128x128xbf16>
    %cst = arith.constant dense<0.000000e+00> : vector<16x128xf32>
    %6 = tpu.matmul %4, %5, %cst {dimension_numbers = #tpu.dot_dimension_numbers<[1], [0], [0], [1], [0, 0, 1, 1], [], []>} : vector<16x128xbf16>, vector<128x128xbf16>, vector<16x128xf32> -> vector<16x128xf32>
    %7 = arith.addf %3, %6 : vector<16x128xf32>
    %c0_6 = arith.constant 0 : index
    %c0_7 = arith.constant 0 : index
    %8 = vector.load %arg8[%c0_6, %c0_7] : memref<16x128xf32, #tpu.memory_space<vmem>>, vector<16x128xf32>
    tpu.vector_store %arg8[%c0_6, %c0_7], %7 {strides = array<i32>} : memref<16x128xf32, #tpu.memory_space<vmem>>, vector<16x128xf32>,
    %c3_i32 = arith.constant 3 : i32
    %9 = arith.cmpi eq, %arg1, %c3_i32 : i32
    %10 = arith.extui %9 : i1 to i32
    %c0_i32_8 = arith.constant 0 : i32
    %11 = arith.cmpi ne, %10, %c0_i32_8 : i32
    scf.if %11 {
      %c0_9 = arith.constant 0 : index
      %c0_10 = arith.constant 0 : index
      %12 = vector.load %arg8[%c0_9, %c0_10] : memref<16x128xf32, #tpu.memory_space<vmem>>, vector<16x128xf32>
      %c0_11 = arith.constant 0 : index
      %c0_12 = arith.constant 0 : index
      %13 = vector.load %arg4[%c0_11, %c0_12] : memref<1x128xf32, #tpu.memory_space<vmem>>, vector<1x128xf32>
      %14 = vector.broadcast %13 : vector<1x128xf32> to vector<16x128xf32>
      %15 = arith.addf %12, %14 : vector<16x128xf32>
      %16 = arith.truncf %15 : vector<16x128xf32> to vector<16x128xbf16>
      %c0_13 = arith.constant 0 : index
      %c0_14 = arith.constant 0 : index
      %17 = vector.load %arg5[%c0_13, %c0_14] : memref<128x128xbf16, #tpu.memory_space<vmem>>, vector<128x128xbf16>
      %cst_15 = arith.constant dense<0.000000e+00> : vector<16x128xf32>
      %18 = tpu.matmul %16, %17, %cst_15 {dimension_numbers = #tpu.dot_dimension_numbers<[1], [0], [0], [1], [0, 0, 1, 1], [], []>} : vector<16x128xbf16>, vector<128x128xbf16>, vector<16x128xf32> -> vector<16x128xf32>
      %c0_16 = arith.constant 0 : index
      %c0_17 = arith.constant 0 : index
      %19 = vector.load %arg6[%c0_16, %c0_17] : memref<1x128xf32, #tpu.memory_space<vmem>>, vector<1x128xf32>
      %20 = vector.broadcast %19 : vector<1x128xf32> to vector<16x128xf32>
      %21 = arith.addf %18, %20 : vector<16x128xf32>
      %22 = tpu.iota {dimensions = array<i32: 1>} : vector<16x128xi32>
      %c4_i32 = arith.constant 4 : i32
      %23 = vector.broadcast %c4_i32 : i32 to vector<16x128xi32>
      %24 = arith.cmpi slt, %22, %23 : vector<16x128xi32>
      %cst_18 = arith.constant -1.000000e+30 : f32
      %25 = vector.broadcast %cst_18 : f32 to vector<16x128xf32>
      %26 = arith.select %24, %21, %25 : vector<16x128xi1>, vector<16x128xf32>
      %cst_19 = arith.constant dense<0xFF800000> : vector<16xf32>
      %27 = vector.multi_reduction <maximumf>, %26, %cst_19 [1] : vector<16x128xf32> to vector<16xf32>
      %28 = vector.shape_cast %27 : vector<16xf32> to vector<16x1xf32>
      %29 = vector.broadcast %28 : vector<16x1xf32> to vector<16x128xf32>
      %30 = arith.subf %26, %29 : vector<16x128xf32>
      %31 = math.exp %30 : vector<16x128xf32>
      %cst_20 = arith.constant dense<0.000000e+00> : vector<16xf32>
      %32 = vector.multi_reduction <add>, %31, %cst_20 [1] : vector<16x128xf32> to vector<16xf32>
      %33 = vector.shape_cast %32 : vector<16xf32> to vector<16x1xf32>
      %34 = tpu.reciprocal %33 {approx = true} : vector<16x1xf32> -> vector<16x1xf32>
      %35 = vector.broadcast %34 : vector<16x1xf32> to vector<16x128xf32>
      %36 = arith.mulf %31, %35 : vector<16x128xf32>
      %c0_21 = arith.constant 0 : index
      %c0_22 = arith.constant 0 : index
      %37 = vector.load %arg7[%c0_21, %c0_22] : memref<16x128xf32, #tpu.memory_space<vmem>>, vector<16x128xf32>
      tpu.vector_store %arg7[%c0_21, %c0_22], %36 {strides = array<i32>} : memref<16x128xf32, #tpu.memory_space<vmem>>, vector<16x128xf32>,
    } else {
    }
    return
  }
  func.func @transform_0(%arg0: i32, %arg1: i32) -> (i32, i32) {
    %c0_i32 = arith.constant 0 : i32
    return %arg0, %arg1 : i32, i32
  }
  func.func @transform_1(%arg0: i32, %arg1: i32) -> (i32, i32) {
    %c0_i32 = arith.constant 0 : i32
    %c0_i32_0 = arith.constant 0 : i32
    return %arg1, %c0_i32 : i32, i32
  }
  func.func @transform_2(%arg0: i32, %arg1: i32) -> (i32, i32) {
    %c0_i32 = arith.constant 0 : i32
    %c0_i32_0 = arith.constant 0 : i32
    %c0_i32_1 = arith.constant 0 : i32
    return %c0_i32, %c0_i32_0 : i32, i32
  }
  func.func @transform_3(%arg0: i32, %arg1: i32) -> (i32, i32) {
    %c0_i32 = arith.constant 0 : i32
    %c0_i32_0 = arith.constant 0 : i32
    %c0_i32_1 = arith.constant 0 : i32
    return %c0_i32, %c0_i32_0 : i32, i32
  }
  func.func @transform_4(%arg0: i32, %arg1: i32) -> (i32, i32) {
    %c0_i32 = arith.constant 0 : i32
    %c0_i32_0 = arith.constant 0 : i32
    %c0_i32_1 = arith.constant 0 : i32
    return %c0_i32, %c0_i32_0 : i32, i32
  }
  func.func @transform_5(%arg0: i32, %arg1: i32) -> (i32, i32) {
    %c0_i32 = arith.constant 0 : i32
    %c0_i32_0 = arith.constant 0 : i32
    return %arg0, %c0_i32 : i32, i32
  }
}

</mosaic_0001>

<llo_original>
// kernel: tpu_custom_call.1
$region0: #{tpu_custom_call.1}
  #allocation0 [shape = 'u32[]', space=smem, size = 0x4, offset = 0x4, fixed_abs, tag = 'smem constant byte address 0x4 - core index']
  #allocation1 [shape = 'u32[72,128]{1,0:T(1,128)}', space=vmem, size = 0x9000, scoped, tag = 'internal scratch']
  #allocation2 [shape = 'f32[16,128]{1,0:T(8,128)}', space=vmem, size = 0x2000, scoped, tag = 'scratch operand']
  %s0 = inlined_call_operand.hbm [shape: bf16[16,512], index: 0, kind: input, shape index: {}]
  %s1 = inlined_call_operand.hbm [shape: bf16[512,128], index: 1, kind: input, shape index: {}]
  %s2 = inlined_call_operand.vmem [shape: f32[1,128], index: 2, kind: input, shape index: {}]
  %s3 = inlined_call_operand.hbm [shape: bf16[128,128], index: 3, kind: input, shape index: {}]
  %s4 = inlined_call_operand.vmem [shape: f32[1,128], index: 4, kind: input, shape index: {}]
  %s5 = inlined_call_operand.hbm [shape: f32[16,128], index: 5, kind: output, shape index: {}]
  %s6 = sld [smem:[#allocation0]]
  $region73: #{tpu_custom_call.1} parent=0
    _
  %s8 = ssub.s32 1, %s6
  %s9 = scalar_select 0, %s8, %s6
  $region1: #{tpu_custom_call.1} parent=0
    #allocation3 [shape = 'u8[8192]{0}', space=vmem, size = 0x2000, scoped, tag = 'input window, operand 0']
    #allocation4 [shape = 's32[2]{0}', space=sflag, size = 0x8, scoped, tag = 'scoped memory for tpu_custom_call.1']
    #allocation5 [shape = 's32[2]{0}', space=sflag, size = 0x8, scoped, tag = 'scoped memory for tpu_custom_call.1']
    #allocation6 [shape = 'u8[65536]{0}', space=vmem, size = 0x10000, scoped, tag = 'input window, operand 1']
    #allocation7 [shape = 's32[2]{0}', space=sflag, size = 0x8, scoped, tag = 'scoped memory for tpu_custom_call.1']
    #allocation8 [shape = 'u8[32768]{0}', space=vmem, size = 0x8000, scoped, tag = 'input window, operand 3, single buffered']
    #allocation9 [shape = 'u8[8192]{0}', space=vmem, size = 0x2000, scoped, tag = 'output window, operand 0, single buffered']
    %10 = vsyncpa [#allocation4], 0
    %s11 = scalar_lea.sflag [#allocation4], 1
    %12 = vsyncpa %s11, 0
    %13 = vsyncpa [#allocation7], 0
    %s14 = scalar_lea.sflag [#allocation7], 1
    %15 = vsyncpa %s14, 0
    %16 = vsyncpa [#allocation5], 0
    loop: start=0, step=1, limit=6
    $region2: #{tpu_custom_call.1} parent=1 // loop_pre_header
      _
    $region3: #{tpu_custom_call.1} parent=1 // loop_header
      %s18 = sphi 0, %s22
      %p19 = scmp.ge.s32.totalorder %s18, 6
      %s25 = sphi 0, %s37
      %s26 = sphi 0, %s33
      %s27 = sphi 0, %s25
      %s28 = sphi 0, %s26
      %s29 = sphi 0, %s27
      %s30 = sphi 0, %s28
      %s42 = sphi 0, %s44
      %s45 = sphi 0, %s42
      %s46 = sphi 0, %s45
      %s62 = sphi 0, %s46
      %s68 = sphi 0, %s70
      %s71 = sphi 0, %s68
      %s72 = sphi 0, %s71
      %s88 = sphi 0, %s72
      %s92 = sphi 0, %s92
      %s94 = sphi 0, %s92
      %s95 = sphi 0, %s94
      %s109 = sphi 0, %s95
      %s113 = sphi 0, %s113
      %s115 = sphi 0, %s113
      %s116 = sphi 0, %s115
      %s130 = sphi 0, %s116
      %s134 = sphi 0, %s134
      %s136 = sphi 0, %s134
      %s137 = sphi 0, %s136
      %s151 = sphi 0, %s137
      %s157 = sphi 0, %s159
      %s160 = sphi 0, %s157
      %s161 = sphi 0, %s160
      %s177 = sphi 0, %s161
    $region4: #{tpu_custom_call.1} parent=1 // loop_header_branch
      %21 = sbr.rel (%p19) target = $region8
    $region5: #{tpu_custom_call.1} parent=1 // loop_body
      %s23 = ssub.s32 %s18, 1
      %s24 = ssub.s32 %s18, 2
      %s31 = sadd.s32 1, %s26
      %p32 = scmp.ge.s32.totalorder %s31, 4
      %s33 = scalar_select %p32, 0, %s31
      %s34 = sadd.s32 1, %s25
      %s35 = scalar_select %p32, %s34, %s25
      %p36 = scmp.ge.s32.totalorder %s35, 1
      %s37 = scalar_select %p36, 0, %s35
      %s38 = ssub.s32 %s25, %s37
      %s39 = ssub.s32 %s26, %s33
      %s40 = sor.u32 %s38, %s39
      %p41 = scmp.eq.s32.totalorder %s40, 0
      %s43 = sadd.s32 %s42, 1
      %s44 = scalar_select %p41, %s42, %s43
      %p47 = pneg %p41
      %p48 = scmp.eq.s32.totalorder %s18, 3
      %p49 = por %p47, %p48
      %p50 = scmp.ne.s32.totalorder %s42, %s45
      %p51 = scmp.eq.s32.totalorder %s18, 0
      %p52 = por %p50, %p51
      %p53 = scmp.ne.s32.totalorder %s42, %s45
      %p54 = scmp.eq.s32.totalorder %s23, 3
      %p55 = por %p53, %p54
      %p56 = scmp.ne.s32.totalorder %s45, %s46
      %p57 = scmp.eq.s32.totalorder %s23, 0
      %p58 = por %p56, %p57
      %p59 = scmp.ne.s32.totalorder %s45, %s46
      %p60 = scmp.eq.s32.totalorder %s24, 3
      %p61 = por %p59, %p60
      %p63 = scmp.ne.s32.totalorder %s46, %s62
      %p64 = scmp.eq.s32.totalorder %s24, 0
      %p65 = por %p63, %p64
      %s66 = ssub.s32 %s26, %s33
      %p67 = scmp.eq.s32.totalorder %s66, 0
      %s69 = sadd.s32 %s68, 1
      %s70 = scalar_select %p67, %s68, %s69
      %p73 = pneg %p67
      %p74 = scmp.eq.s32.totalorder %s18, 3
      %p75 = por %p73, %p74
      %p76 = scmp.ne.s32.totalorder %s68, %s71
      %p77 = scmp.eq.s32.totalorder %s18, 0
      %p78 = por %p76, %p77
      %p79 = scmp.ne.s32.totalorder %s68, %s71
      %p80 = scmp.eq.s32.totalorder %s23, 3
      %p81 = por %p79, %p80
      %p82 = scmp.ne.s32.totalorder %s71, %s72
      %p83 = scmp.eq.s32.totalorder %s23, 0
      %p84 = por %p82, %p83
      %p85 = scmp.ne.s32.totalorder %s71, %s72
      %p86 = scmp.eq.s32.totalorder %s24, 3
      %p87 = por %p85, %p86
      %p89 = scmp.ne.s32.totalorder %s72, %s88
      %p90 = scmp.eq.s32.totalorder %s24, 0
      %p91 = por %p89, %p90
      %s93 = sadd.s32 %s92, 1
      %p96 = scmp.eq.s32.totalorder %s18, 3
      %p97 = scmp.ne.s32.totalorder %s92, %s94
      %p98 = scmp.eq.s32.totalorder %s18, 0
      %p99 = por %p97, %p98
      %p100 = scmp.ne.s32.totalorder %s92, %s94
      %p101 = scmp.eq.s32.totalorder %s23, 3
      %p102 = por %p100, %p101
      %p103 = scmp.ne.s32.totalorder %s94, %s95
      %p104 = scmp.eq.s32.totalorder %s23, 0
      %p105 = por %p103, %p104
      %p106 = scmp.ne.s32.totalorder %s94, %s95
      %p107 = scmp.eq.s32.totalorder %s24, 3
      %p108 = por %p106, %p107
      %p110 = scmp.ne.s32.totalorder %s95, %s109
      %p111 = scmp.eq.s32.totalorder %s24, 0
      %p112 = por %p110, %p111
      %s114 = sadd.s32 %s113, 1
      %p117 = scmp.eq.s32.totalorder %s18, 3
      %p118 = scmp.ne.s32.totalorder %s113, %s115
      %p119 = scmp.eq.s32.totalorder %s18, 0
      %p120 = por %p118, %p119
      %p121 = scmp.ne.s32.totalorder %s113, %s115
      %p122 = scmp.eq.s32.totalorder %s23, 3
      %p123 = por %p121, %p122
      %p124 = scmp.ne.s32.totalorder %s115, %s116
      %p125 = scmp.eq.s32.totalorder %s23, 0
      %p126 = por %p124, %p125
      %p127 = scmp.ne.s32.totalorder %s115, %s116
      %p128 = scmp.eq.s32.totalorder %s24, 3
      %p129 = por %p127, %p128
      %p131 = scmp.ne.s32.totalorder %s116, %s130
      %p132 = scmp.eq.s32.totalorder %s24, 0
      %p133 = por %p131, %p132
      %s135 = sadd.s32 %s134, 1
      %p138 = scmp.eq.s32.totalorder %s18, 3
      %p139 = scmp.ne.s32.totalorder %s134, %s136
      %p140 = scmp.eq.s32.totalorder %s18, 0
      %p141 = por %p139, %p140
      %p142 = scmp.ne.s32.totalorder %s134, %s136
      %p143 = scmp.eq.s32.totalorder %s23, 3
      %p144 = por %p142, %p143
      %p145 = scmp.ne.s32.totalorder %s136, %s137
      %p146 = scmp.eq.s32.totalorder %s23, 0
      %p147 = por %p145, %p146
      %p148 = scmp.ne.s32.totalorder %s136, %s137
      %p149 = scmp.eq.s32.totalorder %s24, 3
      %p150 = por %p148, %p149
      %p152 = scmp.ne.s32.totalorder %s137, %s151
      %p153 = scmp.eq.s32.totalorder %s24, 0
      %p154 = por %p152, %p153
      %s155 = ssub.s32 %s25, %s37
      %p156 = scmp.eq.s32.totalorder %s155, 0
      %s158 = sadd.s32 %s157, 1
      %s159 = scalar_select %p156, %s157, %s158
      %p162 = pneg %p156
      %p163 = scmp.eq.s32.totalorder %s18, 3
      %p164 = por %p162, %p163
      %p165 = scmp.ne.s32.totalorder %s157, %s160
      %p166 = scmp.eq.s32.totalorder %s18, 0
      %p167 = por %p165, %p166
      %p168 = scmp.ne.s32.totalorder %s157, %s160
      %p169 = scmp.eq.s32.totalorder %s23, 3
      %p170 = por %p168, %p169
      %p171 = scmp.ne.s32.totalorder %s160, %s161
      %p172 = scmp.eq.s32.totalorder %s23, 0
      %p173 = por %p171, %p172
      %p174 = scmp.ne.s32.totalorder %s160, %s161
      %p175 = scmp.eq.s32.totalorder %s24, 3
      %p176 = por %p174, %p175
      %p178 = scmp.ne.s32.totalorder %s161, %s177
      %p179 = scmp.eq.s32.totalorder %s24, 0
      %p180 = por %p178, %p179
      %p181 = scmp.le.s32.totalorder 1, %s18
      %p182 = scmp.lt.s32.totalorder %s18, 5
      %p183 = pnand %p181, %p182
      %p184 = pneg %p183
      // Predicated region
      $region9: #{tpu_custom_call.1} parent=5 // pred_check
        _
      $region10: #{tpu_custom_call.1} parent=5 // pred_check_branch
        %186 = sbr.rel (%p183) target = $region12
      $region11: #{tpu_custom_call.1} parent=5 // pred_region
        %s187 = ssub.s32 %s18, 1
        // Predicated region
        $region13: #{tpu_custom_call.1} parent=11 // pred_check
          %p188 = pneg %p105
        $region14: #{tpu_custom_call.1} parent=11 // pred_check_branch
          %190 = sbr.rel (%p188) target = $region16
        $region15: #{tpu_custom_call.1} parent=11 // pred_region
          _
        $region16: #{tpu_custom_call.1} parent=11 // pred_fallthru
          _
        // Predicated region
        $region17: #{tpu_custom_call.1} parent=11 // pred_check
          %p191 = pneg %p126
        $region18: #{tpu_custom_call.1} parent=11 // pred_check_branch
          %193 = sbr.rel (%p191) target = $region20
        $region19: #{tpu_custom_call.1} parent=11 // pred_region
          %195 = vsyncadd [#allocation7], 0
          %s196 = sshll.u32 %s3, 4
          %s197 = int_to_ptr.hbm [resolvable:$true] %s196
          %s198 = sshll.u32 [#allocation8], 4
          %s199 = int_to_ptr.vmem [resolvable:$true] %s198
          %204 = dma.hbm_to_vmem [thread:$0]  %s197, 1024, %s199, [#allocation7], 64, 64, 4
        $region20: #{tpu_custom_call.1} parent=11 // pred_fallthru
          _
        // Predicated region
        $region21: #{tpu_custom_call.1} parent=11 // pred_check
          %p205 = pneg %p147
        $region22: #{tpu_custom_call.1} parent=11 // pred_check_branch
          %207 = sbr.rel (%p205) target = $region24
        $region23: #{tpu_custom_call.1} parent=11 // pred_region
          _
        $region24: #{tpu_custom_call.1} parent=11 // pred_fallthru
          _
      $region12: #{tpu_custom_call.1} parent=5 // pred_fallthru
        _
      %p208 = scmp.lt.s32.totalorder %s18, 4
      // Predicated region
      $region25: #{tpu_custom_call.1} parent=5 // pred_check
        %p209 = pneg %p208
      $region26: #{tpu_custom_call.1} parent=5 // pred_check_branch
        %211 = sbr.rel (%p209) target = $region28
      $region27: #{tpu_custom_call.1} parent=5 // pred_region
        // Predicated region
        $region29: #{tpu_custom_call.1} parent=27 // pred_check
          %p212 = pneg %p52
        $region30: #{tpu_custom_call.1} parent=27 // pred_check_branch
          %214 = sbr.rel (%p212) target = $region32
        $region31: #{tpu_custom_call.1} parent=27 // pred_region
          %s215 = sand.u32 %s42, 1
          %s216 = scalar_lea.sflag [#allocation4], %s215
          %s217 = sand.u32 %s42, 1
          %s218 = smul.addr %s217, 8
          %s219 = scalar_lea.vmem [#allocation3], %s218
          %s220 = smul.u32 2, %s25
          %222 = vsyncadd %s216, 0
          %s223 = smul.addr %s220, 4
          %s224 = sadd.s32 %s26, %s223
          %s225 = smul.addr %s224, 4
          %s226 = scalar_lea.hbm %s0, %s225
          %s227 = sshll.u32 %s226, 4
          %s228 = int_to_ptr.hbm [resolvable:$true] %s227
          %s229 = sshll.u32 %s219, 4
          %s230 = int_to_ptr.vmem [resolvable:$true] %s229
          %235 = dma.hbm_to_vmem [thread:$0]  %s228, 128, %s230, %s216, 256, 64, 4
        $region32: #{tpu_custom_call.1} parent=27 // pred_fallthru
          _
        // Predicated region
        $region33: #{tpu_custom_call.1} parent=27 // pred_check
          %p236 = pneg %p78
        $region34: #{tpu_custom_call.1} parent=27 // pred_check_branch
          %238 = sbr.rel (%p236) target = $region36
        $region35: #{tpu_custom_call.1} parent=27 // pred_region
          %s239 = sand.u32 %s18, 1
          %s240 = scalar_lea.sflag [#allocation7], %s239
          %s241 = sand.u32 %s68, 1
          %s242 = smul.addr %s241, 64
          %s243 = scalar_lea.vmem [#allocation6], %s242
          %s244 = smul.u32 16, %s26
          %246 = vsyncadd %s240, 0
          %s247 = smul.addr %s244, 4
          %s248 = scalar_lea.hbm %s1, %s247
          %s249 = sshll.u32 %s248, 4
          %s250 = int_to_ptr.hbm [resolvable:$true] %s249
          %s251 = sshll.u32 %s243, 4
          %s252 = int_to_ptr.vmem [resolvable:$true] %s251
          %257 = dma.hbm_to_vmem [thread:$0]  %s250, 1024, %s252, %s240, 64, 64, 4
        $region36: #{tpu_custom_call.1} parent=27 // pred_fallthru
          _
      $region28: #{tpu_custom_call.1} parent=5 // pred_fallthru
        _
      %p258 = scmp.le.s32.totalorder 1, %s18
      %p259 = scmp.lt.s32.totalorder %s18, 5
      %p260 = pnand %p258, %p259
      %p261 = pneg %p260
      // Predicated region
      $region37: #{tpu_custom_call.1} parent=5 // pred_check
        _
      $region38: #{tpu_custom_call.1} parent=5 // pred_check_branch
        %263 = sbr.rel (%p260) target = $region40
      $region39: #{tpu_custom_call.1} parent=5 // pred_region
        %s264 = ssub.s32 %s18, 1
        %s265 = sand.u32 %s45, 1
        %s266 = scalar_lea.sflag [#allocation4], %s265
        %s267 = sand.u32 %s45, 1
        %s268 = smul.addr %s267, 8
        %s269 = scalar_lea.vmem [#allocation3], %s268
        // Predicated region
        $region41: #{tpu_custom_call.1} parent=39 // pred_check
          %p270 = pneg %p58
        $region42: #{tpu_custom_call.1} parent=39 // pred_check_branch
          %272 = sbr.rel (%p270) target = $region44
        $region43: #{tpu_custom_call.1} parent=39 // pred_region
          %274 = dma.done %s266, 128
        $region44: #{tpu_custom_call.1} parent=39 // pred_fallthru
          _
        %s275 = sand.u32 %s23, 1
        %s276 = scalar_lea.sflag [#allocation7], %s275
        %s277 = sand.u32 %s71, 1
        %s278 = smul.addr %s277, 64
        %s279 = scalar_lea.vmem [#allocation6], %s278
        // Predicated region
        $region45: #{tpu_custom_call.1} parent=39 // pred_check
          %p280 = pneg %p84
        $region46: #{tpu_custom_call.1} parent=39 // pred_check_branch
          %282 = sbr.rel (%p280) target = $region48
        $region47: #{tpu_custom_call.1} parent=39 // pred_region
          %284 = dma.done %s276, 1024
        $region48: #{tpu_custom_call.1} parent=39 // pred_fallthru
          _
        // Predicated region
        $region49: #{tpu_custom_call.1} parent=39 // pred_check
          %p285 = pneg %p126
        $region50: #{tpu_custom_call.1} parent=39 // pred_check_branch
          %287 = sbr.rel (%p285) target = $region52
        $region51: #{tpu_custom_call.1} parent=39 // pred_region
          %289 = dma.done [#allocation7], 1024
        $region52: #{tpu_custom_call.1} parent=39 // pred_fallthru
          _
        %s290 = sand.u32 %s45, 1
        %s291 = scalar_lea.sflag [#allocation4], %s290
        %s292 = sand.u32 %s45, 1
        %s293 = smul.addr %s292, 8
        %s294 = scalar_lea.vmem [#allocation3], %s293
        %p295 = pneg %p58
        %p296 = pneg %p55
        %s297 = sand.u32 %s23, 1
        %s298 = scalar_lea.sflag [#allocation7], %s297
        %s299 = sand.u32 %s71, 1
        %s300 = smul.addr %s299, 64
        %s301 = scalar_lea.vmem [#allocation6], %s300
        %p302 = pneg %p84
        %p303 = pneg %p81
        %p304 = pneg %p105
        %p305 = pneg %p102
        %p306 = pneg %p126
        %p307 = pneg %p123
        %p308 = pneg %p147
        %p309 = pneg %p144
        %p310 = pneg %p173
        %p311 = pneg %p170
        %s312 = smul.u32 2, %s27
        %s313 = smul.u32 16, %s28
        %s314 = smul.u32 2, %s27
        %p315 = scmp.eq.s32.totalorder %s28, 0
        // Predicated region
        $region53: #{tpu_custom_call.1} parent=39 // pred_check
          %p316 = pneg %p315
        $region54: #{tpu_custom_call.1} parent=39 // pred_check_branch
          %318 = sbr.rel (%p316) target = $region56
        $region55: #{tpu_custom_call.1} parent=39 // pred_region
          %319 = vst [vmem:[#allocation2] sm:$0xff] 0.0
          %320 = vst [vmem:[#allocation2 + $0x8] sm:$0xff] 0.0
        $region56: #{tpu_custom_call.1} parent=39 // pred_fallthru
          _
        %v321 = vld [vmem:[#allocation2] sm:$0xff]
        %v322 = vld [vmem:[#allocation2 + $0x8] sm:$0xff]
        %v323 = vld [vmem:[%s269] sm:$0xf]
        %v324 = vld [vmem:[%s269 + $0x4] sm:$0xf]
        %v325 = vld [vmem:[%s279] sm:$0xf]
        %v326 = vld [vmem:[%s279 + $0x4] sm:$0xf]
        %v327 = vld [vmem:[%s279 + $0x8] sm:$0xf]
        %v328 = vld [vmem:[%s279 + $0xc] sm:$0xf]
        %v329 = vld [vmem:[%s279 + $0x10] sm:$0xf]
        %v330 = vld [vmem:[%s279 + $0x14] sm:$0xf]
        %v331 = vld [vmem:[%s279 + $0x18] sm:$0xf]
        %v332 = vld [vmem:[%s279 + $0x1c] sm:$0xf]
        %v333 = vld [vmem:[%s279 + $0x20] sm:$0xf]
        %v334 = vld [vmem:[%s279 + $0x24] sm:$0xf]
        %v335 = vld [vmem:[%s279 + $0x28] sm:$0xf]
        %v336 = vld [vmem:[%s279 + $0x2c] sm:$0xf]
        %v337 = vld [vmem:[%s279 + $0x30] sm:$0xf]
        %v338 = vld [vmem:[%s279 + $0x34] sm:$0xf]
        %v339 = vld [vmem:[%s279 + $0x38] sm:$0xf]
        %v340 = vld [vmem:[%s279 + $0x3c] sm:$0xf]
        %v343 = vunpack.c.l.b16 %v323
        %v344 = vunpack.c.l.b16 %v324
        %v345 = vpack.c.b16 %v344, %v343
        %v363 = vunpack.c.l.b16 %v325
        %v364 = vunpack.c.l.b16 %v326
        %v365 = vunpack.c.l.b16 %v327
        %v366 = vunpack.c.l.b16 %v328
        %v367 = vunpack.c.l.b16 %v329
        %v368 = vunpack.c.l.b16 %v330
        %v369 = vunpack.c.l.b16 %v331
        %v370 = vunpack.c.l.b16 %v332
        %v371 = vunpack.c.l.b16 %v333
        %v372 = vunpack.c.l.b16 %v334
        %v373 = vunpack.c.l.b16 %v335
        %v374 = vunpack.c.l.b16 %v336
        %v375 = vunpack.c.l.b16 %v337
        %v376 = vunpack.c.l.b16 %v338
        %v377 = vunpack.c.l.b16 %v339
        %v378 = vunpack.c.l.b16 %v340
        %v379 = vpack.c.b16 %v364, %v363
        %v380 = vpack.c.b16 %v366, %v365
        %v381 = vpack.c.b16 %v368, %v367
        %v382 = vpack.c.b16 %v370, %v369
        %v383 = vpack.c.b16 %v372, %v371
        %v384 = vpack.c.b16 %v374, %v373
        %v385 = vpack.c.b16 %v376, %v375
        %v386 = vpack.c.b16 %v378, %v377
        %395 = vmatpush.bf16.msra.mxu0 %v386
        %396 = vmatpush.bf16.msra.mxu0 %v385
        %397 = vmatpush.bf16.msra.mxu0 %v384
        %398 = vmatpush.bf16.msra.mxu0 %v383
        %399 = vmatpush.bf16.msra.mxu0 %v382
        %400 = vmatpush.bf16.msra.mxu0 %v381
        %401 = vmatpush.bf16.msra.mxu0 %v380
        %402 = vmatpush.bf16.msra.mxu0 %v379
        %403 = vmatmul.bf16.gmra.mxu0 %v345
        %v404 = vpop.f32.mrf.mxu0
        %v405 = vadd.f32 0.0, %v404
        %v406 = vpop.f32.mrf.mxu0
        %v407 = vadd.f32 0.0, %v406
        %408 = vdwg.mxu0
        %v409 = vadd.f32 %v321, %v405
        %v410 = vadd.f32 %v322, %v407
        %411 = vst [vmem:[#allocation2] sm:$0xff] %v409
        %412 = vst [vmem:[#allocation2 + $0x8] sm:$0xff] %v410
        %p413 = scmp.eq.s32.totalorder %s28, 3
        // Predicated region
        $region57: #{tpu_custom_call.1} parent=39 // pred_check
          %p414 = pneg %p413
        $region58: #{tpu_custom_call.1} parent=39 // pred_check_branch
          %416 = sbr.rel (%p414) target = $region60
        $region59: #{tpu_custom_call.1} parent=39 // pred_region
          %v417 = vld [vmem:[#allocation2] sm:$0xff]
          %v418 = vld [vmem:[#allocation2 + $0x8] sm:$0xff]
          %v419 = vld [vmem:[%s2] sm:$0x1]
          %v421 = vperm.slane %v419, 0
          %v423 = vadd.f32 %v417, %v421
          %v424 = vadd.f32 %v418, %v421
          %v425 = vpack.c.bf16 %v424, %v423
          %v426 = vld [vmem:[#allocation8] sm:$0xf]
          %v427 = vld [vmem:[#allocation8 + $0x4] sm:$0xf]
          %v428 = vld [vmem:[#allocation8 + $0x8] sm:$0xf]
          %v429 = vld [vmem:[#allocation8 + $0xc] sm:$0xf]
          %v430 = vld [vmem:[#allocation8 + $0x10] sm:$0xf]
          %v431 = vld [vmem:[#allocation8 + $0x14] sm:$0xf]
          %v432 = vld [vmem:[#allocation8 + $0x18] sm:$0xf]
          %v433 = vld [vmem:[#allocation8 + $0x1c] sm:$0xf]
          %v434 = vld [vmem:[#allocation8 + $0x20] sm:$0xf]
          %v435 = vld [vmem:[#allocation8 + $0x24] sm:$0xf]
          %v436 = vld [vmem:[#allocation8 + $0x28] sm:$0xf]
          %v437 = vld [vmem:[#allocation8 + $0x2c] sm:$0xf]
          %v438 = vld [vmem:[#allocation8 + $0x30] sm:$0xf]
          %v439 = vld [vmem:[#allocation8 + $0x34] sm:$0xf]
          %v440 = vld [vmem:[#allocation8 + $0x38] sm:$0xf]
          %v441 = vld [vmem:[#allocation8 + $0x3c] sm:$0xf]
          %v442 = vld [vmem:[%s4] sm:$0x1]
          %v444 = vperm.slane %v442, 0
          %v462 = vunpack.c.l.b16 %v426
          %v463 = vunpack.c.l.b16 %v427
          %v464 = vunpack.c.l.b16 %v428
          %v465 = vunpack.c.l.b16 %v429
          %v466 = vunpack.c.l.b16 %v430
          %v467 = vunpack.c.l.b16 %v431
          %v468 = vunpack.c.l.b16 %v432
          %v469 = vunpack.c.l.b16 %v433
          %v470 = vunpack.c.l.b16 %v434
          %v471 = vunpack.c.l.b16 %v435
          %v472 = vunpack.c.l.b16 %v436
          %v473 = vunpack.c.l.b16 %v437
          %v474 = vunpack.c.l.b16 %v438
          %v475 = vunpack.c.l.b16 %v439
          %v476 = vunpack.c.l.b16 %v440
          %v477 = vunpack.c.l.b16 %v441
          %v478 = vpack.c.b16 %v463, %v462
          %v479 = vpack.c.b16 %v465, %v464
          %v480 = vpack.c.b16 %v467, %v466
          %v481 = vpack.c.b16 %v469, %v468
          %v482 = vpack.c.b16 %v471, %v470
          %v483 = vpack.c.b16 %v473, %v472
          %v484 = vpack.c.b16 %v475, %v474
          %v485 = vpack.c.b16 %v477, %v476
          %494 = vmatpush.bf16.msra.mxu0 %v485
          %495 = vmatpush.bf16.msra.mxu0 %v484
          %496 = vmatpush.bf16.msra.mxu0 %v483
          %497 = vmatpush.bf16.msra.mxu0 %v482
          %498 = vmatpush.bf16.msra.mxu0 %v481
          %499 = vmatpush.bf16.msra.mxu0 %v480
          %500 = vmatpush.bf16.msra.mxu0 %v479
          %501 = vmatpush.bf16.msra.mxu0 %v478
          %502 = vmatmul.bf16.gmra.mxu0 %v425
          %v503 = vpop.f32.mrf.mxu0
          %v504 = vadd.f32 %v444, %v503
          %v505 = vpop.f32.mrf.mxu0
          %v506 = vadd.f32 %v444, %v505
          %507 = vdwg.mxu0
          %v508 = vlaneseq
          %v509 = vand.u32 %v508, 127
          %vm510 = vcmp.lt.s32.totalorder %v509, 4
          %v511 = vsel %vm510, %v504, -1e+30
          %v512 = vsel %vm510, %v506, -1e+30
          %513 = vmax.xlane.f32.xlu0 %v511
          %v514 = vpop.xlane.xlu0 %513
          %515 = vmax.xlane.f32.xlu0 %v512
          %v516 = vpop.xlane.xlu0 %515
          %v517 = vsub.f32 %v511, %v514
          %v518 = vsub.f32 %v512, %v516
          %v519 = vmul.f32 %v517, 1.442695
          %v520 = vpow.pop %v519
          %v521 = vmul.f32 %v518, 1.442695
          %v522 = vpow.pop %v521
          %523 = vadd.xlane.f32.xlu0 %v520
          %v524 = vpop.xlane.xlu0 %523
          %525 = vadd.xlane.f32.xlu0 %v522
          %v526 = vpop.xlane.xlu0 %525
          %v527 = vrcp.pop %v524
          %v528 = vrcp.pop %v526
          %v529 = vmul.f32 %v520, %v527
          %v530 = vmul.f32 %v522, %v528
          %531 = vst [vmem:[#allocation9] sm:$0xff] %v529
          %532 = vst [vmem:[#allocation9 + $0x8] sm:$0xff] %v530
        $region60: #{tpu_custom_call.1} parent=39 // pred_fallthru
          _
        // Predicated region
        $region61: #{tpu_custom_call.1} parent=39 // pred_check
          %p533 = pneg %p170
        $region62: #{tpu_custom_call.1} parent=39 // pred_check_branch
          %535 = sbr.rel (%p533) target = $region64
        $region63: #{tpu_custom_call.1} parent=39 // pred_region
          %s536 = smul.u32 2, %s27
          %538 = vsyncadd [#allocation5], 0
          %s539 = smul.addr %s536, 8
          %s540 = scalar_lea.hbm %s5, %s539
          %s541 = sshll.u32 [#allocation9], 4
          %s542 = int_to_ptr.vmem [resolvable:$true] %s541
          %s543 = sshll.u32 %s540, 4
          %s544 = int_to_ptr.hbm [resolvable:$true] %s543
          %549 = dma.vmem_to_hbm [thread:$0]  %s542, 256, %s544, [#allocation5], 128, 128, 8
        $region64: #{tpu_custom_call.1} parent=39 // pred_fallthru
          _
        // Predicated region
        $region65: #{tpu_custom_call.1} parent=39 // pred_check
          %p550 = pneg %p170
        $region66: #{tpu_custom_call.1} parent=39 // pred_check_branch
          %552 = sbr.rel (%p550) target = $region68
        $region67: #{tpu_custom_call.1} parent=39 // pred_region
          %554 = dma.done [#allocation5], 256
        $region68: #{tpu_custom_call.1} parent=39 // pred_fallthru
          _
      $region40: #{tpu_custom_call.1} parent=5 // pred_fallthru
        _
      %p555 = scmp.le.s32.totalorder 2, %s18
      // Predicated region
      $region69: #{tpu_custom_call.1} parent=5 // pred_check
        %p556 = pneg %p555
      $region70: #{tpu_custom_call.1} parent=5 // pred_check_branch
        %558 = sbr.rel (%p556) target = $region72
      $region71: #{tpu_custom_call.1} parent=5 // pred_region
        %s559 = ssub.s32 %s18, 2
      $region72: #{tpu_custom_call.1} parent=5 // pred_fallthru
        _
    $region6: #{tpu_custom_call.1} parent=1 // loop_footer
      %s22 = sadd.s32 1, %s18
    $region7: #{tpu_custom_call.1} parent=1 // loop_footer_branch
      %17 = sbr.rel target = $region3
    $region8: #{tpu_custom_call.1} parent=1 // loop_exit
      _
    %560 = vsyncpa [#allocation4], 1
    %s561 = scalar_lea.sflag [#allocation4], 1
    %562 = vsyncpa %s561, 1
    %563 = vsyncpa [#allocation7], 1
    %s564 = scalar_lea.sflag [#allocation7], 1
    %565 = vsyncpa %s564, 1
    %566 = vsyncpa [#allocation5], 1
    %s567 = scalar_lea.sflag [#allocation5], 1
    %568 = vsyncpa %s567, 1

</llo_original>
